<compile_context>
chip_gen: v6e
topology: v6e:2x2x1
jax: 0.10.0
libtpu: 0.0.40
codegen_flags: <defaults>
</compile_context>

<pallas_src>
import functools
import math

import jax
import jax.numpy as jnp
from jax.experimental import pallas as pl
from jax.experimental.pallas import tpu as pltpu


# ----------------------------------------------------------------------------
# Tiling helper: exact tiles only (divisor of dim or the full dim), so no
# padded K blocks and no masked-garbage corner cases at toy or BERT sizes.
# ----------------------------------------------------------------------------
def _pick_tile(dim, target):
    if dim <= target:
        return dim
    if dim % target == 0:
        return target
    return dim


# ----------------------------------------------------------------------------
# Fused linear kernel:  y = act(x @ W + b) [+ residual] [-> LayerNorm]
# x:(M,K) bf16, W:(K,N) bf16, bias/gamma/beta f32, f32 accumulate, bf16 store.
# ----------------------------------------------------------------------------
def _fused_linear_kernel(*refs, act, has_res, has_ln, eps):
    x_ref, w_ref, b_ref = refs[0], refs[1], refs[2]
    pos = 3
    if has_res:
        res_ref = refs[pos]
        pos += 1
    if has_ln:
        g_ref, bb_ref = refs[pos], refs[pos + 1]
        pos += 2
    o_ref = refs[pos]
    acc_ref = refs[pos + 1]

    @pl.when(pl.program_id(2) == 0)
    def _init():
        acc_ref[...] = jnp.zeros_like(acc_ref)

    acc_ref[...] += jnp.dot(x_ref[...], w_ref[...],
                            preferred_element_type=jnp.float32)

    @pl.when(pl.program_id(2) == pl.num_programs(2) - 1)
    def _finalize():
        y = acc_ref[...] + b_ref[...]                      # f32 epilogue math
        if act == "gelu":
            y = jax.nn.gelu(y, approximate=False)          # exact erf GELU
        elif act == "tanh":
            y = jnp.tanh(y)
        if has_res:
            y = y + res_ref[...].astype(jnp.float32)
        if has_ln:
            mean = jnp.mean(y, axis=-1, keepdims=True)
            var = jnp.mean(jnp.square(y - mean), axis=-1, keepdims=True)
            y = (y - mean) * jax.lax.rsqrt(var + eps)
            y = y * g_ref[...] + bb_ref[...]
        o_ref[...] = y.astype(o_ref.dtype)


def fused_linear(x, w, b, *, residual=None, ln=None, act="none",
                 out_dtype=jnp.bfloat16, eps=1e-12, tm=256, tn=256, tk=512):
    """y = act(x @ w + b); optionally y = LayerNorm(y + residual)."""
    M, K = x.shape
    _, N = w.shape
    has_res = residual is not None
    has_ln = ln is not None

    btm = _pick_tile(M, tm)
    btk = _pick_tile(K, tk)
    btn = N if has_ln else _pick_tile(N, tn)    # LN needs the full feature dim
    grid = (M // btm, N // btn, K // btk)

    in_specs = [
        pl.BlockSpec((btm, btk), lambda i, j, k: (i, k)),
        pl.BlockSpec((btk, btn), lambda i, j, k: (k, j)),
        pl.BlockSpec((1, btn), lambda i, j, k: (0, j)),
    ]
    args = [x, w, b.reshape(1, N)]
    if has_res:
        in_specs.append(pl.BlockSpec((btm, btn), lambda i, j, k: (i, j)))
        args.append(residual)
    if has_ln:
        g, bb = ln
        in_specs.append(pl.BlockSpec((1, btn), lambda i, j, k: (0, j)))
        in_specs.append(pl.BlockSpec((1, btn), lambda i, j, k: (0, j)))
        args.extend([g.reshape(1, N), bb.reshape(1, N)])

    return pl.pallas_call(
        functools.partial(_fused_linear_kernel, act=act, has_res=has_res,
                          has_ln=has_ln, eps=eps),
        out_shape=jax.ShapeDtypeStruct((M, N), out_dtype),
        grid_spec=pltpu.PrefetchScalarGridSpec(
            num_scalar_prefetch=0,
            grid=grid,
            in_specs=in_specs,
            out_specs=pl.BlockSpec((btm, btn), lambda i, j, k: (i, j)),
            scratch_shapes=[pltpu.VMEM((btm, btn), jnp.float32)],
        ),
        compiler_params=pltpu.CompilerParams(
            dimension_semantics=("parallel", "parallel", "arbitrary")),
    )(*args)


# ----------------------------------------------------------------------------
# Row-tiled LayerNorm (embedding LN: no residual, no zeros tensor).
# ----------------------------------------------------------------------------
def _layernorm_kernel(x_ref, g_ref, b_ref, o_ref, *, eps):
    x = x_ref[...].astype(jnp.float32)
    mean = jnp.mean(x, axis=-1, keepdims=True)
    var = jnp.mean(jnp.square(x - mean), axis=-1, keepdims=True)
    y = (x - mean) * jax.lax.rsqrt(var + eps)
    o_ref[...] = (y * g_ref[...] + b_ref[...]).astype(o_ref.dtype)


def layernorm(x, gamma, beta, *, eps=1e-12, out_dtype=jnp.bfloat16, tm=512):
    M, D = x.shape
    btm = _pick_tile(M, tm)
    return pl.pallas_call(
        functools.partial(_layernorm_kernel, eps=eps),
        out_shape=jax.ShapeDtypeStruct((M, D), out_dtype),
        grid_spec=pltpu.PrefetchScalarGridSpec(
            num_scalar_prefetch=0,
            grid=(M // btm,),
            in_specs=[pl.BlockSpec((btm, D), lambda i: (i, 0)),
                      pl.BlockSpec((1, D), lambda i: (0, 0)),
                      pl.BlockSpec((1, D), lambda i: (0, 0))],
            out_specs=pl.BlockSpec((btm, D), lambda i: (i, 0)),
        ),
        compiler_params=pltpu.CompilerParams(dimension_semantics=("parallel",)),
    )(x, gamma.reshape(1, D), beta.reshape(1, D))


# ----------------------------------------------------------------------------
# Multi-head self-attention: one batch element per grid step, heads sliced
# directly from the fused QKV block (no JAX-side to_heads/from_heads), mask
# passed once per batch (no per-head duplication).
# ----------------------------------------------------------------------------
def _attention_kernel(qkv_ref, m_ref, o_ref, *, nH, dH, scale):
    H = nH * dH
    qkv = qkv_ref[0]            # (S, 3H) bf16
    m = m_ref[0]                # (1, S)  f32 additive mask

    outs = []
    for h in range(nH):         # statically unrolled over heads
        q = qkv[:, h * dH:(h + 1) * dH]
        k = qkv[:, H + h * dH:H + (h + 1) * dH]
        v = qkv[:, 2 * H + h * dH:2 * H + (h + 1) * dH]
        s = jnp.dot(q, k.T, preferred_element_type=jnp.float32) * scale + m
        s_max = jnp.max(s, axis=-1, keepdims=True)
        p = jnp.exp(s - s_max)
        p = p * pl.reciprocal(jnp.sum(p, axis=-1, keepdims=True), approx=True)
        ctx = jnp.dot(p.astype(qkv.dtype), v,
                      preferred_element_type=jnp.float32)
        outs.append(ctx.astype(o_ref.dtype))
    # single lane-dense store of the merged-head context
    o_ref[0] = jnp.concatenate(outs, axis=-1)


def attention(qkv, mask_b1s, *, num_heads, scale, out_dtype=jnp.bfloat16):
    # TODO(synk): for very long S add a flash-style KV loop with online softmax.
    B, S, H3 = qkv.shape
    H = H3 // 3
    dH = H // num_heads
    return pl.pallas_call(
        functools.partial(_attention_kernel, nH=num_heads, dH=dH, scale=scale),
        out_shape=jax.ShapeDtypeStruct((B, S, H), out_dtype),
        grid_spec=pltpu.PrefetchScalarGridSpec(
            num_scalar_prefetch=0,
            grid=(B,),
            in_specs=[pl.BlockSpec((1, S, H3), lambda b: (b, 0, 0)),
                      pl.BlockSpec((1, 1, S), lambda b: (b, 0, 0))],
            out_specs=pl.BlockSpec((1, S, H), lambda b: (b, 0, 0)),
        ),
        compiler_params=pltpu.CompilerParams(dimension_semantics=("parallel",)),
    )(qkv, mask_b1s)


# ----------------------------------------------------------------------------
# Parameter initialization (deterministic; matmul weights bf16, the rest f32).
# ----------------------------------------------------------------------------
def init_params(key, cfg):
    H, I = cfg["hidden"], cfg["inter"]
    std = 0.02

    def nrm(k, shape, dtype=jnp.float32):
        return (std * jax.random.normal(k, shape, jnp.float32)).astype(dtype)

    n_keys = 3 + cfg["layers"] * 4 + 2
    keys = iter(jax.random.split(key, n_keys))

    params = {
        "word_emb": nrm(next(keys), (cfg["vocab"], H)),
        "pos_emb": nrm(next(keys), (cfg["max_pos"], H)),
        "type_emb": nrm(next(keys), (cfg["type_vocab"], H)),
        "emb_ln_g": jnp.ones((H,), jnp.float32),
        "emb_ln_b": jnp.zeros((H,), jnp.float32),
        "layers": [],
    }
    for _ in range(cfg["layers"]):
        layer = {
            # fused QKV projection: columns laid out [Q | K | V], heads within.
            "qkv_w": nrm(next(keys), (H, 3 * H), jnp.bfloat16),
            "qkv_b": jnp.zeros((3 * H,), jnp.float32),
            "ao_w": nrm(next(keys), (H, H), jnp.bfloat16),
            "ao_b": jnp.zeros((H,), jnp.float32),
            "ao_ln_g": jnp.ones((H,), jnp.float32),
            "ao_ln_b": jnp.zeros((H,), jnp.float32),
            "i_w": nrm(next(keys), (H, I), jnp.bfloat16),
            "i_b": jnp.zeros((I,), jnp.float32),
            "o_w": nrm(next(keys), (I, H), jnp.bfloat16),
            "o_b": jnp.zeros((H,), jnp.float32),
            "o_ln_g": jnp.ones((H,), jnp.float32),
            "o_ln_b": jnp.zeros((H,), jnp.float32),
        }
        params["layers"].append(layer)

    params["cls_dense_w"] = nrm(next(keys), (H, H), jnp.bfloat16)
    params["cls_dense_b"] = jnp.zeros((H,), jnp.float32)
    params["cls_out_w"] = nrm(next(keys), (H, cfg["num_labels"]), jnp.bfloat16)
    params["cls_out_b"] = jnp.zeros((cfg["num_labels"],), jnp.float32)
    return params


# ----------------------------------------------------------------------------
# Forward pass (embedding gathers are XLA glue, everything else is Pallas).
# ----------------------------------------------------------------------------
def metabert_forward(params, input_ids, attention_mask, token_type_ids,
                     num_step, cfg, return_pooled=False):
    del num_step  # TODO(synk): per-step LayerNorm weights not modelled (shared weights path)
    B, S = input_ids.shape
    H, nH = cfg["hidden"], cfg["heads"]
    dH = H // nH
    M = B * S

    # --- embeddings: word + position + token_type (gather in XLA), then LN ---
    pos_ids = jnp.arange(S, dtype=jnp.int32)
    emb = (params["word_emb"][input_ids]
           + params["pos_emb"][pos_ids][None, :, :]
           + params["type_emb"][token_type_ids])                  # (B, S, H) f32
    x = layernorm(emb.reshape(M, H),
                  params["emb_ln_g"], params["emb_ln_b"])         # (M, H) bf16

    # --- extended attention mask: (1 - mask) * -10000, shared across heads ---
    ext = ((1.0 - attention_mask.astype(jnp.float32)) * -10000.0)[:, None, :]  # (B,1,S)

    scale = 1.0 / math.sqrt(dH)

    # --- encoder ---
    for layer in params["layers"]:
        qkv = fused_linear(x, layer["qkv_w"], layer["qkv_b"])      # (M, 3H) bf16
        ctx = attention(qkv.reshape(B, S, 3 * H), ext,
                        num_heads=nH, scale=scale)                 # (B, S, H) bf16
        x = fused_linear(ctx.reshape(M, H), layer["ao_w"], layer["ao_b"],
                         residual=x,
                         ln=(layer["ao_ln_g"], layer["ao_ln_b"]))  # attn out + res + LN
        inter = fused_linear(x, layer["i_w"], layer["i_b"], act="gelu")
        x = fused_linear(inter, layer["o_w"], layer["o_b"],
                         residual=x,
                         ln=(layer["o_ln_g"], layer["o_ln_b"]))    # FFN out + res + LN

    sequence_output = x.reshape(B, S, H)

    # --- classification head: dense(CLS) -> tanh -> out_proj ---
    cls = sequence_output[:, 0, :]                                  # (B, H) bf16
    pooled = fused_linear(cls, params["cls_dense_w"], params["cls_dense_b"],
                          act="tanh")
    if return_pooled:
        return pooled, sequence_output
    logits = fused_linear(pooled, params["cls_out_w"], params["cls_out_b"],
                          out_dtype=jnp.float32)
    return logits, sequence_output


# ----------------------------------------------------------------------------
if __name__ == "__main__":
    cfg = dict(vocab=100, max_pos=32, type_vocab=2, hidden=32, heads=4,
               layers=2, inter=64, num_labels=3)
    B, S = 2, 8

    params = init_params(jax.random.PRNGKey(0), cfg)

    k_ids, _ = jax.random.split(jax.random.PRNGKey(0))
    input_ids = jax.random.randint(k_ids, (B, S), 0, cfg["vocab"], dtype=jnp.int32)
    attention_mask = jnp.ones((B, S), dtype=jnp.float32).at[1, 6:].set(0.0)
    token_type_ids = jnp.zeros((B, S), dtype=jnp.int32)

    logits, seq_out = metabert_forward(
        params, input_ids, attention_mask, token_type_ids, num_step=0, cfg=cfg)
    jax.block_until_ready((logits, seq_out))

    assert logits.shape == (B, cfg["num_labels"])
    assert seq_out.shape == (B, S, cfg["hidden"])
    assert bool(jnp.all(jnp.isfinite(logits)))
    print("KERNEL_OK")
</pallas_src>

<mosaic_0001>
module attributes {stable_mosaic.version = 11 : i64} {
  func.func @_layernorm_kernel(%arg0: i32, %arg1: memref<16x32xf32, #tpu.memory_space<vmem>>, %arg2: memref<1x32xf32, #tpu.memory_space<vmem>>, %arg3: memref<1x32xf32, #tpu.memory_space<vmem>>, %arg4: memref<16x32xbf16, #tpu.memory_space<vmem>>) attributes {dimension_semantics = [#tpu.dimension_semantics<parallel>], iteration_bounds = array<i64: 1>, scalar_prefetch = 0 : i64, scratch_operands = 0 : i64, tpu.core_type = #tpu.core_type<tc>, window_params = [{transform_indices = @transform_0, window_bounds = array<i64: 16, 32>}, {pipeline_mode = #tpu.pipeline_mode<synchronous>, transform_indices = @transform_1, window_bounds = array<i64: 1, 32>}, {pipeline_mode = #tpu.pipeline_mode<synchronous>, transform_indices = @transform_2, window_bounds = array<i64: 1, 32>}, {transform_indices = @transform_3, window_bounds = array<i64: 16, 32>}]} {
    %c0 = arith.constant 0 : index
    %c0_0 = arith.constant 0 : index
    %0 = vector.load %arg1[%c0, %c0_0] : memref<16x32xf32, #tpu.memory_space<vmem>>, vector<16x32xf32>
    %cst = arith.constant dense<0.000000e+00> : vector<16xf32>
    %1 = vector.multi_reduction <add>, %0, %cst [1] : vector<16x32xf32> to vector<16xf32>
    %2 = vector.shape_cast %1 : vector<16xf32> to vector<16x1xf32>
    %cst_1 = arith.constant 3.200000e+01 : f32
    %3 = vector.broadcast %cst_1 : f32 to vector<16x1xf32>
    %4 = arith.divf %2, %3 : vector<16x1xf32>
    %5 = vector.broadcast %4 : vector<16x1xf32> to vector<16x32xf32>
    %6 = arith.subf %0, %5 : vector<16x32xf32>
    %7 = arith.mulf %6, %6 : vector<16x32xf32>
    %cst_2 = arith.constant dense<0.000000e+00> : vector<16xf32>
    %8 = vector.multi_reduction <add>, %7, %cst_2 [1] : vector<16x32xf32> to vector<16xf32>
    %9 = vector.shape_cast %8 : vector<16xf32> to vector<16x1xf32>
    %cst_3 = arith.constant 3.200000e+01 : f32
    %10 = vector.broadcast %cst_3 : f32 to vector<16x1xf32>
    %11 = arith.divf %9, %10 : vector<16x1xf32>
    %12 = vector.broadcast %4 : vector<16x1xf32> to vector<16x32xf32>
    %13 = arith.subf %0, %12 : vector<16x32xf32>
    %cst_4 = arith.constant 9.99999996E-13 : f32
    %14 = vector.broadcast %cst_4 : f32 to vector<16x1xf32>
    %15 = arith.addf %11, %14 : vector<16x1xf32>
    %16 = math.rsqrt %15 : vector<16x1xf32>
    %17 = vector.broadcast %16 : vector<16x1xf32> to vector<16x32xf32>
    %18 = arith.mulf %13, %17 : vector<16x32xf32>
    %c0_5 = arith.constant 0 : index
    %c0_6 = arith.constant 0 : index
    %19 = vector.load %arg2[%c0_5, %c0_6] : memref<1x32xf32, #tpu.memory_space<vmem>>, vector<1x32xf32>
    %20 = vector.broadcast %19 : vector<1x32xf32> to vector<16x32xf32>
    %21 = arith.mulf %18, %20 : vector<16x32xf32>
    %c0_7 = arith.constant 0 : index
    %c0_8 = arith.constant 0 : index
    %22 = vector.load %arg3[%c0_7, %c0_8] : memref<1x32xf32, #tpu.memory_space<vmem>>, vector<1x32xf32>
    %23 = vector.broadcast %22 : vector<1x32xf32> to vector<16x32xf32>
    %24 = arith.addf %21, %23 : vector<16x32xf32>
    %25 = arith.truncf %24 : vector<16x32xf32> to vector<16x32xbf16>
    %c0_9 = arith.constant 0 : index
    %c0_10 = arith.constant 0 : index
    %26 = vector.load %arg4[%c0_9, %c0_10] : memref<16x32xbf16, #tpu.memory_space<vmem>>, vector<16x32xbf16>
    tpu.vector_store %arg4[%c0_9, %c0_10], %25 {strides = array<i32>} : memref<16x32xbf16, #tpu.memory_space<vmem>>, vector<16x32xbf16>,
    return
  }
  func.func @transform_0(%arg0: i32) -> (i32, i32) {
    %c0_i32 = arith.constant 0 : i32
    %c0_i32_0 = arith.constant 0 : i32
    return %arg0, %c0_i32 : i32, i32
  }
  func.func @transform_1(%arg0: i32) -> (i32, i32) {
    %c0_i32 = arith.constant 0 : i32
    %c0_i32_0 = arith.constant 0 : i32
    %c0_i32_1 = arith.constant 0 : i32
    return %c0_i32, %c0_i32_0 : i32, i32
  }
  func.func @transform_2(%arg0: i32) -> (i32, i32) {
    %c0_i32 = arith.constant 0 : i32
    %c0_i32_0 = arith.constant 0 : i32
    %c0_i32_1 = arith.constant 0 : i32
    return %c0_i32, %c0_i32_0 : i32, i32
  }
  func.func @transform_3(%arg0: i32) -> (i32, i32) {
    %c0_i32 = arith.constant 0 : i32
    %c0_i32_0 = arith.constant 0 : i32
    return %arg0, %c0_i32 : i32, i32
  }
}

</mosaic_0001>

<llo_original>
// kernel: tpu_custom_call.1
$region0: #{tpu_custom_call.1}
  #allocation0 [shape = 'u32[]', space=smem, size = 0x4, offset = 0x4, fixed_abs, tag = 'smem constant byte address 0x4 - core index']
  #allocation1 [shape = 'u32[144,128]{1,0:T(1,128)}', space=vmem, size = 0x12000, scoped, tag = 'internal scratch']
  %s0 = inlined_call_operand.hbm [shape: f32[16,32], index: 0, kind: input, shape index: {}]
  %s1 = inlined_call_operand.vmem [shape: f32[1,32], index: 1, kind: input, shape index: {}]
  %s2 = inlined_call_operand.vmem [shape: f32[1,32], index: 2, kind: input, shape index: {}]
  %s3 = inlined_call_operand.hbm [shape: bf16[16,32], index: 3, kind: output, shape index: {}]
  %s4 = sld [smem:[#allocation0]]
  $region26: #{tpu_custom_call.1} parent=0
    _
  %s6 = ssub.s32 1, %s4
  %s7 = scalar_select 0, %s6, %s4
  $region1: #{tpu_custom_call.1} parent=0
    #allocation2 [shape = 'u8[8192]{0}', space=vmem, size = 0x2000, scoped, tag = 'input window, operand 0, single buffered']
    #allocation3 [shape = 's32[1]{0}', space=sflag, size = 0x4, scoped, tag = 'scoped memory for tpu_custom_call.1']
    #allocation4 [shape = 's32[1]{0}', space=sflag, size = 0x4, scoped, tag = 'scoped memory for tpu_custom_call.1']
    #allocation5 [shape = 'u8[4096]{0}', space=vmem, size = 0x1000, scoped, tag = 'output window, operand 0, single buffered']
    %8 = vsyncpa [#allocation3], 0
    %9 = vsyncpa [#allocation4], 0
    // Predicated region
    $region2: #{tpu_custom_call.1} parent=1 // pred_check
      _
    $region3: #{tpu_custom_call.1} parent=1 // pred_check_branch
      %11 = sbr.rel (0) target = $region5
    $region4: #{tpu_custom_call.1} parent=1 // pred_region
      %s13 = ssub.s32 256, 256
      %14 = vsyncadd [#allocation3], %s13
      %s15 = sshll.u32 [#allocation2], 4
      %s16 = int_to_ptr.vmem [resolvable:$true] %s15
      %21 = dma.hbm_to_vmem [thread:$0]  %s0, 256, %s16, [#allocation3], 128, 128, 8
    $region5: #{tpu_custom_call.1} parent=1 // pred_fallthru
      _
    // Predicated region
    $region6: #{tpu_custom_call.1} parent=1 // pred_check
      _
    $region7: #{tpu_custom_call.1} parent=1 // pred_check_branch
      %23 = sbr.rel (0) target = $region9
    $region8: #{tpu_custom_call.1} parent=1 // pred_region
      _
    $region9: #{tpu_custom_call.1} parent=1 // pred_fallthru
      _
    // Predicated region
    $region10: #{tpu_custom_call.1} parent=1 // pred_check
      _
    $region11: #{tpu_custom_call.1} parent=1 // pred_check_branch
      %25 = sbr.rel (0) target = $region13
    $region12: #{tpu_custom_call.1} parent=1 // pred_region
      _
    $region13: #{tpu_custom_call.1} parent=1 // pred_fallthru
      _
    // Predicated region
    $region14: #{tpu_custom_call.1} parent=1 // pred_check
      _
    $region15: #{tpu_custom_call.1} parent=1 // pred_check_branch
      %27 = sbr.rel (0) target = $region17
    $region16: #{tpu_custom_call.1} parent=1 // pred_region
      %28 = dma.done [#allocation3], 256
    $region17: #{tpu_custom_call.1} parent=1 // pred_fallthru
      _
    %v29 = vld [vmem:[#allocation2] sm:$0xff]
    %v30 = vld [vmem:[#allocation2 + $0x8] sm:$0xff]
    %vm31 = vcmask 261120
    %v32 = vsel %vm31, %v29, 0.0
    %33 = vadd.xlane.f32.xlu0 %v32
    %v34 = vpop.xlane.xlu0 %33
    %v35 = vsel %vm31, %v30, 0.0
    %36 = vadd.xlane.f32.xlu0 %v35
    %v37 = vpop.xlane.xlu0 %36
    %v38 = vrcp.pop 32.0
    %v39 = vmul.f32 %v34, %v38
    %v40 = vmul.f32 %v37, %v38
    %v41 = vsub.f32 %v29, %v39
    %v42 = vsub.f32 %v30, %v40
    %v43 = vmul.f32 %v41, %v41
    %v44 = vmul.f32 %v42, %v42
    %v45 = vsel %vm31, %v43, 0.0
    %46 = vadd.xlane.f32.xlu0 %v45
    %v47 = vpop.xlane.xlu0 %46
    %v48 = vsel %vm31, %v44, 0.0
    %49 = vadd.xlane.f32.xlu0 %v48
    %v50 = vpop.xlane.xlu0 %49
    %v51 = vmul.f32 %v47, %v38
    %v52 = vmul.f32 %v50, %v38
    %v53 = vadd.f32 %v51, 1e-12
    %v54 = vadd.f32 %v52, 1e-12
    %v55 = vrsqrt.pop %v53
    %v56 = vrsqrt.pop %v54
    %v57 = vmul.f32 %v41, %v55
    %v58 = vmul.f32 %v42, %v56
    %v59 = vld [vmem:[%s1] sm:$0x1]
    %v61 = vlaneseq
    %v62 = vshrl.u32 %v61, 7
    %v63 = vsub.s32 0, %v62
    %v64 = vrot.slane %v59, %v63
    %v66 = vmul.f32 %v57, %v64
    %v67 = vmul.f32 %v58, %v64
    %v68 = vld [vmem:[%s2] sm:$0x1]
    %v70 = vlaneseq
    %v71 = vshrl.u32 %v70, 7
    %v72 = vsub.s32 0, %v71
    %v73 = vrot.slane %v68, %v72
    %v75 = vadd.f32 %v66, %v73
    %v76 = vadd.f32 %v67, %v73
    %v77 = vpack.c.bf16 %v76, %v75
    %v79 = vunpack.c.l.b16 %v77
    %v80 = vunpack.c.h.b16 %v77
    %v81 = vpack.c.b16 %v79, %v79
    %v82 = vpack.c.b16 %v80, %v80
    %vm85 = vcmask 257024
    %86 = vst.msk [vmem:[#allocation5] sm:$0xf] %vm85, %v81
    %87 = vst.msk [vmem:[#allocation5 + $0x4] sm:$0xf] %vm85, %v82
    // Predicated region
    $region18: #{tpu_custom_call.1} parent=1 // pred_check
      _
    $region19: #{tpu_custom_call.1} parent=1 // pred_check_branch
      %89 = sbr.rel (0) target = $region21
    $region20: #{tpu_custom_call.1} parent=1 // pred_region
      %s91 = ssub.s32 128, 128
      %92 = vsyncadd [#allocation4], %s91
      %s93 = sshll.u32 [#allocation5], 4
      %s94 = int_to_ptr.vmem [resolvable:$true] %s93
      %99 = dma.vmem_to_hbm [thread:$0]  %s94, 128, %s3, [#allocation4], 64, 64, 4
    $region21: #{tpu_custom_call.1} parent=1 // pred_fallthru
      _
    // Predicated region
    $region22: #{tpu_custom_call.1} parent=1 // pred_check
      _
    $region23: #{tpu_custom_call.1} parent=1 // pred_check_branch
      %101 = sbr.rel (0) target = $region25
    $region24: #{tpu_custom_call.1} parent=1 // pred_region
      %102 = dma.done [#allocation4], 128
    $region25: #{tpu_custom_call.1} parent=1 // pred_fallthru
      _
    %103 = vsyncpa [#allocation3], 1
    %104 = vsyncpa [#allocation4], 1

</llo_original>
